<compile_context>
chip_gen: v5e
topology: v5e:2x2
jax: 0.10.0
libtpu: 0.0.40
codegen_flags: <defaults>
</compile_context>

<pallas_src>
import math
import jax
import jax.numpy as jnp
from jax.experimental import pallas as pl
from jax.experimental.pallas import tpu as pltpu

SUBLANE = 8


def _round_up(x: int, m: int) -> int:
    return (x + m - 1) // m * m


def _vmem_capacity_bytes() -> int:
    try:
        return int(pltpu.get_tpu_info().vmem_capacity_bytes)
    except Exception:
        return 64 * 1024 * 1024  # conservative (v7x per-TC) fallback


def make_mlp_policy_kernel(n_layers: int):
    """Pallas kernel: full MLP forward for one batch tile (weights stay resident)."""
    num_linear = n_layers + 1

    def kernel(*refs):
        # refs = (obs_tile, w0, b0, ..., wL, bL, mean_tile)
        obs_ref = refs[0]
        wb_refs = refs[1:1 + 2 * num_linear]
        mean_ref = refs[-1]

        x = obs_ref[...]  # f32
        # Hidden layers: Linear -> tanh. MXU is bf16-native on v5e/v6e/v7x, so
        # cast the dot operands to bf16 and accumulate in f32; the bias add and
        # tanh stay f32 (v5e has no bf16 VPU/EUP).
        for i in range(n_layers):
            w = wb_refs[2 * i][...]
            b = wb_refs[2 * i + 1][...]
            y = jnp.dot(x.astype(jnp.bfloat16), w.astype(jnp.bfloat16),
                        preferred_element_type=jnp.float32) + b
            x = jnp.tanh(y)
        # Output layer: Linear (identity activation).
        w = wb_refs[2 * n_layers][...]
        b = wb_refs[2 * n_layers + 1][...]
        mean_ref[...] = (
            jnp.dot(x.astype(jnp.bfloat16), w.astype(jnp.bfloat16),
                    preferred_element_type=jnp.float32) + b
        ).astype(mean_ref.dtype)

    return kernel


def mlp_policy_forward(obs, weights, biases, logstd, *, batch_tile=None):
    """Runs the MLP policy forward with a batch-tiled Pallas call.

    obs:     (B, ob_dim) float32
    weights: list of (in_dim, out_dim) float32 arrays, length n_layers + 1
    biases:  list of (out_dim,)         float32 arrays, length n_layers + 1
    logstd:  (ac_dim,) float32
    returns: mean (B, ac_dim), std (ac_dim,)
    """
    n_layers = len(weights) - 1
    B, ob_dim = obs.shape
    ac_dim = weights[-1].shape[1]
    dims = [ob_dim] + [w.shape[1] for w in weights]

    # --- batch tile selection -------------------------------------------------
    # Big tiles amortize the ~0.35 us per-grid-step overhead, but cap the tile
    # at half the batch so the grid has >= 2 steps and the "parallel" batch axis
    # can be sharded across both TensorCores on v7x.
    if batch_tile is None:
        if B >= 2 * SUBLANE:
            half = _round_up((B + 1) // 2, SUBLANE)
            TB = min(1024, half)
        else:
            TB = _round_up(max(B, SUBLANE), SUBLANE)
    else:
        TB = _round_up(max(int(batch_tile), SUBLANE), SUBLANE)  # validate user tile
    B_p = _round_up(B, TB)

    # Only the batch axis is (possibly) padded — feature dims stay un-padded.
    if B_p != B:
        obs_in = jnp.zeros((B_p, ob_dim), jnp.float32).at[:B].set(obs)
    else:
        obs_in = obs.astype(jnp.float32)

    kernel = make_mlp_policy_kernel(n_layers)

    # --- BlockSpecs: batch-tiled obs/mean, single-buffered resident params ----
    in_specs = [pl.BlockSpec((TB, ob_dim), lambda i: (i, 0))]
    inputs = [obs_in]
    for w, b in zip(weights, biases):
        b2 = b.reshape(1, -1)  # 2-D bias row (cheap reshape, no padding pass)
        in_specs.append(pl.BlockSpec(w.shape, lambda i: (0, 0),
                                     pipeline_mode=pl.Buffered(1)))
        in_specs.append(pl.BlockSpec(b2.shape, lambda i: (0, 0),
                                     pipeline_mode=pl.Buffered(1)))
        inputs.append(w.astype(jnp.float32))
        inputs.append(b2.astype(jnp.float32))
    out_spec = pl.BlockSpec((TB, ac_dim), lambda i: (i, 0))

    grid = (B_p // TB,)

    # --- advisory cost estimate (real math only, no padded zeros) -------------
    flops = 2 * B_p * sum(a * b for a, b in zip(dims[:-1], dims[1:]))
    transcendentals = B_p * sum(dims[1:-1])  # tanh
    param_bytes = 4 * sum(w.size + b.size for w, b in zip(weights, biases))
    bytes_accessed = 4 * (B_p * ob_dim + B_p * ac_dim) + param_bytes

    # --- VMEM budget: double-buffered obs/mean tiles + single-buffered params +
    #     activations; clamp to this generation's physical VMEM.
    max_dim = max(dims)
    vmem_est = (
        2 * 4 * TB * (ob_dim + ac_dim)   # double-buffered obs in / mean out
        + param_bytes                    # resident (single-buffered) weights + biases
        + 2 * 4 * TB * max_dim           # intermediate activations (f32 + bf16 copies)
    )
    vmem_limit = int(min(max(int(vmem_est * 2), 16 * 1024 * 1024),
                         _vmem_capacity_bytes()))

    mean_p = pl.pallas_call(
        kernel,
        out_shape=jax.ShapeDtypeStruct((B_p, ac_dim), jnp.float32),
        grid=grid,
        in_specs=in_specs,
        out_specs=out_spec,
        compiler_params=pltpu.CompilerParams(
            dimension_semantics=("parallel",),
            vmem_limit_bytes=vmem_limit,
        ),
        cost_estimate=pl.CostEstimate(
            flops=flops,
            transcendentals=transcendentals,
            bytes_accessed=bytes_accessed,
        ),
    )(*inputs)

    mean = mean_p[:B] if B_p != B else mean_p
    std = jnp.exp(logstd.reshape(-1))  # tiny, obs-independent: computed outside kernel
    return mean, std


def init_mlp_policy_params(key, ob_dim, ac_dim, n_layers, layer_size):
    """Parameter init matching nn.Linear default U(-1/sqrt(in), 1/sqrt(in))."""
    dims = [ob_dim] + [layer_size] * n_layers + [ac_dim]
    weights, biases = [], []
    for i in range(len(dims) - 1):
        in_d, out_d = dims[i], dims[i + 1]
        key, wk, bk = jax.random.split(key, 3)
        bound = 1.0 / math.sqrt(in_d)
        weights.append(jax.random.uniform(wk, (in_d, out_d), jnp.float32, -bound, bound))
        biases.append(jax.random.uniform(bk, (out_d,), jnp.float32, -bound, bound))
    logstd = jnp.zeros((ac_dim,), jnp.float32)  # nn.Parameter(torch.zeros(ac_dim))
    return weights, biases, logstd


def reference_forward(obs, weights, biases, logstd):
    x = obs
    for w, b in zip(weights[:-1], biases[:-1]):
        x = jnp.tanh(x @ w + b)
    mean = x @ weights[-1] + biases[-1]
    std = jnp.exp(logstd)
    return mean, std


if __name__ == "__main__":
    # Small shapes consistent with MLPPolicy.__init__:
    #   ob_dim=16, ac_dim=4, n_layers=2, layer_size=32, batch=8
    B, ob_dim, ac_dim, n_layers, layer_size = 8, 16, 4, 2, 32

    key = jax.random.PRNGKey(0)
    key, obs_key, param_key = jax.random.split(key, 3)

    obs = jax.random.normal(obs_key, (B, ob_dim), jnp.float32)
    weights, biases, logstd = init_mlp_policy_params(
        param_key, ob_dim, ac_dim, n_layers, layer_size
    )

    mean, std = mlp_policy_forward(obs, weights, biases, logstd)
    jax.block_until_ready((mean, std))

    # Correctness check against plain-JAX f32 reference (bf16-matmul tolerance).
    ref_mean, ref_std = reference_forward(obs, weights, biases, logstd)
    assert mean.shape == (B, ac_dim)
    assert std.shape == (ac_dim,)
    assert jnp.allclose(mean, ref_mean, atol=1e-2, rtol=1e-2)
    assert jnp.allclose(std, ref_std, atol=1e-6, rtol=1e-6)

    # Second check: non-tile-multiple batch exercising the multi-step grid
    # (>= 2 steps -> both TCs on v7x) and the batch-padding path.
    B2 = 100
    key, obs_key2 = jax.random.split(key)
    obs2 = jax.random.normal(obs_key2, (B2, ob_dim), jnp.float32)
    mean2, std2 = mlp_policy_forward(obs2, weights, biases, logstd)
    jax.block_until_ready((mean2, std2))
    ref_mean2, _ = reference_forward(obs2, weights, biases, logstd)
    assert mean2.shape == (B2, ac_dim)
    assert jnp.allclose(mean2, ref_mean2, atol=1e-2, rtol=1e-2)

    # TODO(synk): torch.distributions.MultivariateNormal construction / sampling
    # (get_action) has no Pallas equivalent; the kernel emits (mean, std).
    print("KERNEL_OK")
</pallas_src>

<mosaic_0001>
module attributes {stable_mosaic.version = 11 : i64} {
  func.func @kernel(%arg0: i32, %arg1: memref<8x16xf32, #tpu.memory_space<vmem>>, %arg2: memref<16x32xf32, #tpu.memory_space<vmem>>, %arg3: memref<1x32xf32, #tpu.memory_space<vmem>>, %arg4: memref<32x32xf32, #tpu.memory_space<vmem>>, %arg5: memref<1x32xf32, #tpu.memory_space<vmem>>, %arg6: memref<32x4xf32, #tpu.memory_space<vmem>>, %arg7: memref<1x4xf32, #tpu.memory_space<vmem>>, %arg8: memref<8x4xf32, #tpu.memory_space<vmem>>) attributes {dimension_semantics = [#tpu.dimension_semantics<parallel>], iteration_bounds = array<i64: 1>, scalar_prefetch = 0 : i64, scratch_operands = 0 : i64, tpu.core_type = #tpu.core_type<tc>, window_params = [{transform_indices = @transform_0, window_bounds = array<i64: 8, 16>}, {pipeline_mode = #tpu.pipeline_mode<synchronous>, transform_indices = @transform_1, window_bounds = array<i64: 16, 32>}, {pipeline_mode = #tpu.pipeline_mode<synchronous>, transform_indices = @transform_2, window_bounds = array<i64: 1, 32>}, {pipeline_mode = #tpu.pipeline_mode<synchronous>, transform_indices = @transform_3, window_bounds = array<i64: 32, 32>}, {pipeline_mode = #tpu.pipeline_mode<synchronous>, transform_indices = @transform_4, window_bounds = array<i64: 1, 32>}, {pipeline_mode = #tpu.pipeline_mode<synchronous>, transform_indices = @transform_5, window_bounds = array<i64: 32, 4>}, {pipeline_mode = #tpu.pipeline_mode<synchronous>, transform_indices = @transform_6, window_bounds = array<i64: 1, 4>}, {transform_indices = @transform_7, window_bounds = array<i64: 8, 4>}]} {
    %c0 = arith.constant 0 : index
    %c0_0 = arith.constant 0 : index
    %0 = vector.load %arg1[%c0, %c0_0] : memref<8x16xf32, #tpu.memory_space<vmem>>, vector<8x16xf32>
    %c0_1 = arith.constant 0 : index
    %c0_2 = arith.constant 0 : index
    %1 = vector.load %arg2[%c0_1, %c0_2] : memref<16x32xf32, #tpu.memory_space<vmem>>, vector<16x32xf32>
    %c0_3 = arith.constant 0 : index
    %c0_4 = arith.constant 0 : index
    %2 = vector.load %arg3[%c0_3, %c0_4] : memref<1x32xf32, #tpu.memory_space<vmem>>, vector<1x32xf32>
    %3 = arith.truncf %0 : vector<8x16xf32> to vector<8x16xbf16>
    %4 = arith.truncf %1 : vector<16x32xf32> to vector<16x32xbf16>
    %cst = arith.constant dense<0.000000e+00> : vector<8x32xf32>
    %5 = tpu.matmul %3, %4, %cst {dimension_numbers = #tpu.dot_dimension_numbers<[1], [0], [0], [1], [0, 0, 1, 1], [], []>} : vector<8x16xbf16>, vector<16x32xbf16>, vector<8x32xf32> -> vector<8x32xf32>
    %6 = vector.broadcast %2 : vector<1x32xf32> to vector<8x32xf32>
    %7 = arith.addf %5, %6 : vector<8x32xf32>
    %8 = math.tanh %7 : vector<8x32xf32>
    %c0_5 = arith.constant 0 : index
    %c0_6 = arith.constant 0 : index
    %9 = vector.load %arg4[%c0_5, %c0_6] : memref<32x32xf32, #tpu.memory_space<vmem>>, vector<32x32xf32>
    %c0_7 = arith.constant 0 : index
    %c0_8 = arith.constant 0 : index
    %10 = vector.load %arg5[%c0_7, %c0_8] : memref<1x32xf32, #tpu.memory_space<vmem>>, vector<1x32xf32>
    %11 = arith.truncf %8 : vector<8x32xf32> to vector<8x32xbf16>
    %12 = arith.truncf %9 : vector<32x32xf32> to vector<32x32xbf16>
    %cst_9 = arith.constant dense<0.000000e+00> : vector<8x32xf32>
    %13 = tpu.matmul %11, %12, %cst_9 {dimension_numbers = #tpu.dot_dimension_numbers<[1], [0], [0], [1], [0, 0, 1, 1], [], []>} : vector<8x32xbf16>, vector<32x32xbf16>, vector<8x32xf32> -> vector<8x32xf32>
    %14 = vector.broadcast %10 : vector<1x32xf32> to vector<8x32xf32>
    %15 = arith.addf %13, %14 : vector<8x32xf32>
    %16 = math.tanh %15 : vector<8x32xf32>
    %c0_10 = arith.constant 0 : index
    %c0_11 = arith.constant 0 : index
    %17 = vector.load %arg6[%c0_10, %c0_11] : memref<32x4xf32, #tpu.memory_space<vmem>>, vector<32x4xf32>
    %c0_12 = arith.constant 0 : index
    %c0_13 = arith.constant 0 : index
    %18 = vector.load %arg7[%c0_12, %c0_13] : memref<1x4xf32, #tpu.memory_space<vmem>>, vector<1x4xf32>
    %19 = arith.truncf %16 : vector<8x32xf32> to vector<8x32xbf16>
    %20 = arith.truncf %17 : vector<32x4xf32> to vector<32x4xbf16>
    %cst_14 = arith.constant dense<0.000000e+00> : vector<8x4xf32>
    %21 = tpu.matmul %19, %20, %cst_14 {dimension_numbers = #tpu.dot_dimension_numbers<[1], [0], [0], [1], [0, 0, 1, 1], [], []>} : vector<8x32xbf16>, vector<32x4xbf16>, vector<8x4xf32> -> vector<8x4xf32>
    %22 = vector.broadcast %18 : vector<1x4xf32> to vector<8x4xf32>
    %23 = arith.addf %21, %22 : vector<8x4xf32>
    %c0_15 = arith.constant 0 : index
    %c0_16 = arith.constant 0 : index
    %24 = vector.load %arg8[%c0_15, %c0_16] : memref<8x4xf32, #tpu.memory_space<vmem>>, vector<8x4xf32>
    tpu.vector_store %arg8[%c0_15, %c0_16], %23 {strides = array<i32>} : memref<8x4xf32, #tpu.memory_space<vmem>>, vector<8x4xf32>,
    return
  }
  func.func @transform_0(%arg0: i32) -> (i32, i32) {
    %c0_i32 = arith.constant 0 : i32
    %c0_i32_0 = arith.constant 0 : i32
    return %arg0, %c0_i32 : i32, i32
  }
  func.func @transform_1(%arg0: i32) -> (i32, i32) {
    %c0_i32 = arith.constant 0 : i32
    %c0_i32_0 = arith.constant 0 : i32
    %c0_i32_1 = arith.constant 0 : i32
    return %c0_i32, %c0_i32_0 : i32, i32
  }
  func.func @transform_2(%arg0: i32) -> (i32, i32) {
    %c0_i32 = arith.constant 0 : i32
    %c0_i32_0 = arith.constant 0 : i32
    %c0_i32_1 = arith.constant 0 : i32
    return %c0_i32, %c0_i32_0 : i32, i32
  }
  func.func @transform_3(%arg0: i32) -> (i32, i32) {
    %c0_i32 = arith.constant 0 : i32
    %c0_i32_0 = arith.constant 0 : i32
    %c0_i32_1 = arith.constant 0 : i32
    return %c0_i32, %c0_i32_0 : i32, i32
  }
  func.func @transform_4(%arg0: i32) -> (i32, i32) {
    %c0_i32 = arith.constant 0 : i32
    %c0_i32_0 = arith.constant 0 : i32
    %c0_i32_1 = arith.constant 0 : i32
    return %c0_i32, %c0_i32_0 : i32, i32
  }
  func.func @transform_5(%arg0: i32) -> (i32, i32) {
    %c0_i32 = arith.constant 0 : i32
    %c0_i32_0 = arith.constant 0 : i32
    %c0_i32_1 = arith.constant 0 : i32
    return %c0_i32, %c0_i32_0 : i32, i32
  }
  func.func @transform_6(%arg0: i32) -> (i32, i32) {
    %c0_i32 = arith.constant 0 : i32
    %c0_i32_0 = arith.constant 0 : i32
    %c0_i32_1 = arith.constant 0 : i32
    return %c0_i32, %c0_i32_0 : i32, i32
  }
  func.func @transform_7(%arg0: i32) -> (i32, i32) {
    %c0_i32 = arith.constant 0 : i32
    %c0_i32_0 = arith.constant 0 : i32
    return %arg0, %c0_i32 : i32, i32
  }
}

</mosaic_0001>

<llo_original>
// kernel: tpu_custom_call.1
$region0: #{tpu_custom_call.1}
  #allocation0 [shape = 'u32[]', space=smem, size = 0x4, offset = 0x4, fixed_abs, tag = 'smem constant byte address 0x4 - core index']
  #allocation1 [shape = 'u32[72,128]{1,0:T(1,128)}', space=vmem, size = 0x9000, scoped, tag = 'internal scratch']
  %s0 = inlined_call_operand.hbm [shape: f32[8,16], index: 0, kind: input, shape index: {}]
  %s1 = inlined_call_operand.hbm [shape: f32[16,32], index: 1, kind: input, shape index: {}]
  %s2 = inlined_call_operand.vmem [shape: f32[1,32], index: 2, kind: input, shape index: {}]
  %s3 = inlined_call_operand.vmem [shape: f32[32,32], index: 3, kind: input, shape index: {}]
  %s4 = inlined_call_operand.vmem [shape: f32[1,32], index: 4, kind: input, shape index: {}]
  %s5 = inlined_call_operand.vmem [shape: f32[32,4], index: 5, kind: input, shape index: {}]
  %s6 = inlined_call_operand.vmem [shape: f32[1,4], index: 6, kind: input, shape index: {}]
  %s7 = inlined_call_operand.vmem [shape: f32[8,4], index: 7, kind: output, shape index: {}]
  %s8 = sld [smem:[#allocation0]]
  $region46: #{tpu_custom_call.1} parent=0
    _
  %s10 = ssub.s32 1, %s8
  %s11 = scalar_select 0, %s10, %s8
  $region1: #{tpu_custom_call.1} parent=0
    #allocation2 [shape = 'u8[4096]{0}', space=vmem, size = 0x1000, scoped, tag = 'input window, operand 0, single buffered']
    #allocation3 [shape = 's32[1]{0}', space=sflag, size = 0x4, scoped, tag = 'scoped memory for tpu_custom_call.1']
    #allocation4 [shape = 'u8[8192]{0}', space=vmem, size = 0x2000, scoped, tag = 'input window, operand 1, single buffered']
    #allocation5 [shape = 's32[1]{0}', space=sflag, size = 0x4, scoped, tag = 'scoped memory for tpu_custom_call.1']
    %12 = vsyncpa [#allocation3], 0
    %13 = vsyncpa [#allocation5], 0
    // Predicated region
    $region2: #{tpu_custom_call.1} parent=1 // pred_check
      _
    $region3: #{tpu_custom_call.1} parent=1 // pred_check_branch
      %15 = sbr.rel (0) target = $region5
    $region4: #{tpu_custom_call.1} parent=1 // pred_region
      %17 = vsyncadd [#allocation3], 0
      %s19 = sshll.u32 %s0, 4
      %s20 = int_to_ptr.hbm [resolvable:$true] %s19
      %s21 = sshll.u32 [#allocation2], 4
      %s22 = int_to_ptr.vmem [resolvable:$true] %s21
      %24 = dma.hbm_to_vmem [thread:$0]  %s20, 128, %s22, [#allocation3]
    $region5: #{tpu_custom_call.1} parent=1 // pred_fallthru
      _
    // Predicated region
    $region6: #{tpu_custom_call.1} parent=1 // pred_check
      _
    $region7: #{tpu_custom_call.1} parent=1 // pred_check_branch
      %26 = sbr.rel (0) target = $region9
    $region8: #{tpu_custom_call.1} parent=1 // pred_region
      %28 = vsyncadd [#allocation5], 0
      %s29 = sshll.u32 %s1, 4
      %s30 = int_to_ptr.hbm [resolvable:$true] %s29
      %s31 = sshll.u32 [#allocation4], 4
      %s32 = int_to_ptr.vmem [resolvable:$true] %s31
      %37 = dma.hbm_to_vmem [thread:$0]  %s30, 256, %s32, [#allocation5], 128, 128, 8
    $region9: #{tpu_custom_call.1} parent=1 // pred_fallthru
      _
    // Predicated region
    $region10: #{tpu_custom_call.1} parent=1 // pred_check
      _
    $region11: #{tpu_custom_call.1} parent=1 // pred_check_branch
      %39 = sbr.rel (0) target = $region13
    $region12: #{tpu_custom_call.1} parent=1 // pred_region
      _
    $region13: #{tpu_custom_call.1} parent=1 // pred_fallthru
      _
    // Predicated region
    $region14: #{tpu_custom_call.1} parent=1 // pred_check
      _
    $region15: #{tpu_custom_call.1} parent=1 // pred_check_branch
      %41 = sbr.rel (0) target = $region17
    $region16: #{tpu_custom_call.1} parent=1 // pred_region
      _
    $region17: #{tpu_custom_call.1} parent=1 // pred_fallthru
      _
    // Predicated region
    $region18: #{tpu_custom_call.1} parent=1 // pred_check
      _
    $region19: #{tpu_custom_call.1} parent=1 // pred_check_branch
      %43 = sbr.rel (0) target = $region21
    $region20: #{tpu_custom_call.1} parent=1 // pred_region
      _
    $region21: #{tpu_custom_call.1} parent=1 // pred_fallthru
      _
    // Predicated region
    $region22: #{tpu_custom_call.1} parent=1 // pred_check
      _
    $region23: #{tpu_custom_call.1} parent=1 // pred_check_branch
      %45 = sbr.rel (0) target = $region25
    $region24: #{tpu_custom_call.1} parent=1 // pred_region
      _
    $region25: #{tpu_custom_call.1} parent=1 // pred_fallthru
      _
    // Predicated region
    $region26: #{tpu_custom_call.1} parent=1 // pred_check
      _
    $region27: #{tpu_custom_call.1} parent=1 // pred_check_branch
      %47 = sbr.rel (0) target = $region29
    $region28: #{tpu_custom_call.1} parent=1 // pred_region
      _
    $region29: #{tpu_custom_call.1} parent=1 // pred_fallthru
      _
    // Predicated region
    $region30: #{tpu_custom_call.1} parent=1 // pred_check
      _
    $region31: #{tpu_custom_call.1} parent=1 // pred_check_branch
      %49 = sbr.rel (0) target = $region33
    $region32: #{tpu_custom_call.1} parent=1 // pred_region
      %51 = dma.done [#allocation3], 128
    $region33: #{tpu_custom_call.1} parent=1 // pred_fallthru
      _
    // Predicated region
    $region34: #{tpu_custom_call.1} parent=1 // pred_check
      _
    $region35: #{tpu_custom_call.1} parent=1 // pred_check_branch
      %53 = sbr.rel (0) target = $region37
    $region36: #{tpu_custom_call.1} parent=1 // pred_region
      %55 = dma.done [#allocation5], 256
    $region37: #{tpu_custom_call.1} parent=1 // pred_fallthru
      _
    %v57 = vld [vmem:[#allocation2] sm:$0xff]
    %v58 = vld [vmem:[#allocation4] sm:$0xff]
    %v59 = vld [vmem:[#allocation4 + $0x8] sm:$0xff]
    %v60 = vld [vmem:[%s2] sm:$0x1]
    %v61 = vpack.c.bf16 %v57, %v57
    %v62 = vpack.c.bf16 %v59, %v58
    %v64 = vperm.slane %v60, 0
    %vm66 = vcmask 130048
    %v68 = vsel %vm66, %v61, 0
    %70 = vmatpush.bf16.msra.mxu0 0
    %71 = vmatpush.bf16.msra.mxu0 0
    %72 = vmatpush.bf16.msra.mxu0 0
    %73 = vmatpush.bf16.msra.mxu0 0
    %74 = vmatpush.bf16.msra.mxu0 0
    %75 = vmatpush.bf16.msra.mxu0 0
    %76 = vmatpush.bf16.msra.mxu0 0
    %77 = vmatpush.bf16.msra.mxu0 %v62
    %78 = vmatmul.bf16.gmra.mxu0 %v68
    %v79 = vpop.f32.mrf.mxu0
    %v80 = vadd.f32 %v64, %v79
    %v81 = vpop.f32.mrf.mxu0
    %82 = vdwg.mxu0
    %v83 = vtanh.pop %v80
    %v84 = vld [vmem:[%s3] sm:$0xff]
    %v85 = vld [vmem:[%s3 + $0x8] sm:$0xff]
    %v86 = vld [vmem:[%s3 + $0x10] sm:$0xff]
    %v87 = vld [vmem:[%s3 + $0x18] sm:$0xff]
    %v88 = vld [vmem:[%s4] sm:$0x1]
    %v89 = vpack.c.bf16 %v83, %v83
    %v90 = vpack.c.bf16 %v85, %v84
    %v91 = vpack.c.bf16 %v87, %v86
    %v93 = vperm.slane %v88, 0
    %vm95 = vcmask 261120
    %v97 = vsel %vm95, %v89, 0
    %99 = vmatpush.bf16.msra.mxu0 0
    %100 = vmatpush.bf16.msra.mxu0 0
    %101 = vmatpush.bf16.msra.mxu0 0
    %102 = vmatpush.bf16.msra.mxu0 0
    %103 = vmatpush.bf16.msra.mxu0 0
    %104 = vmatpush.bf16.msra.mxu0 0
    %105 = vmatpush.bf16.msra.mxu0 %v91
    %106 = vmatpush.bf16.msra.mxu0 %v90
    %107 = vmatmul.bf16.gmra.mxu0 %v97
    %v108 = vpop.f32.mrf.mxu0
    %v109 = vadd.f32 %v93, %v108
    %v110 = vpop.f32.mrf.mxu0
    %111 = vdwg.mxu0
    %v112 = vtanh.pop %v109
    %v113 = vld [vmem:[%s5] sm:$0xff]
    %v114 = vld [vmem:[%s5 + $0x8] sm:$0xff]
    %v115 = vld [vmem:[%s5 + $0x10] sm:$0xff]
    %v116 = vld [vmem:[%s5 + $0x18] sm:$0xff]
    %v117 = vld [vmem:[%s6] sm:$0x1]
    %v118 = vpack.c.bf16 %v112, %v112
    %v119 = vpack.c.bf16 %v114, %v113
    %v120 = vpack.c.bf16 %v116, %v115
    %v122 = vperm.slane %v117, 0
    %v125 = vsel %vm95, %v118, 0
    %127 = vmatpush.bf16.msra.mxu0 0
    %128 = vmatpush.bf16.msra.mxu0 0
    %129 = vmatpush.bf16.msra.mxu0 0
    %130 = vmatpush.bf16.msra.mxu0 0
    %131 = vmatpush.bf16.msra.mxu0 0
    %132 = vmatpush.bf16.msra.mxu0 0
    %133 = vmatpush.bf16.msra.mxu0 %v120
    %134 = vmatpush.bf16.msra.mxu0 %v119
    %135 = vmatmul.bf16.gmra.mxu0 %v125
    %v136 = vpop.f32.mrf.mxu0
    %v137 = vadd.f32 %v122, %v136
    %v138 = vpop.f32.mrf.mxu0
    %139 = vdwg.mxu0
    %vm140 = vcmask 31744
    %141 = vst.msk [vmem:[%s7] sm:$0xff] %vm140, %v137
    // Predicated region
    $region38: #{tpu_custom_call.1} parent=1 // pred_check
      _
    $region39: #{tpu_custom_call.1} parent=1 // pred_check_branch
      %143 = sbr.rel (0) target = $region41
    $region40: #{tpu_custom_call.1} parent=1 // pred_region
      _
    $region41: #{tpu_custom_call.1} parent=1 // pred_fallthru
      _
    // Predicated region
    $region42: #{tpu_custom_call.1} parent=1 // pred_check
      _
    $region43: #{tpu_custom_call.1} parent=1 // pred_check_branch
      %145 = sbr.rel (0) target = $region45
    $region44: #{tpu_custom_call.1} parent=1 // pred_region
      _
    $region45: #{tpu_custom_call.1} parent=1 // pred_fallthru
      _
    %146 = vsyncpa [#allocation3], 1
    %147 = vsyncpa [#allocation5], 1

</llo_original>
